<compile_context>
chip_gen: v7x
topology: tpu7x:2x2x1
jax: 0.10.0
libtpu: 0.0.40
codegen_flags: <defaults>
</compile_context>

<pallas_src>
import functools

import jax
import jax.numpy as jnp
from jax import lax
from jax.experimental import pallas as pl
from jax.experimental.pallas import tpu as pltpu


def _mm_chain_kernel(x1_ref, x2_ref, o_ref, acc_ref, *, k_chunk, mxu_dtype):
    n_rows = x1_ref.shape[0]
    n_chunks = n_rows // k_chunk

    x2 = x2_ref[...]
    x2_mxu = x2.astype(mxu_dtype) if mxu_dtype is not None else x2

    acc_ref[...] = jnp.zeros_like(acc_ref)

    def body(i, carry):
        row0 = pl.multiple_of(i * k_chunk, k_chunk)
        x1c = x1_ref[pl.ds(row0, k_chunk), :]
        x1c_mxu = x1c.astype(mxu_dtype) if mxu_dtype is not None else x1c

        # v1 chunk = x1[rows, :] @ x2_panel   (f32 accumulation on the MXU)
        v1c = jnp.dot(x1c_mxu, x2_mxu, preferred_element_type=jnp.float32)

        # acc += x1[rows, :]^T @ v1_chunk -- fold the transpose into the MXU feed by
        # contracting dim 0 of both operands (no XLU transpose). v1 is kept in f32 so a
        # reduced-precision mxu_dtype does not compound rounding across both matmuls.
        v2c = lax.dot_general(
            x1c.astype(jnp.float32), v1c,
            dimension_numbers=(((0,), (0,)), ((), ())),
            preferred_element_type=jnp.float32,
        )
        acc_ref[...] += v2c
        return carry

    lax.fori_loop(0, n_chunks, body, 0, unroll=True)

    o_ref[...] = acc_ref[...].astype(o_ref.dtype)


def _round_up(x, m):
    return (x + m - 1) // m * m


def _pick_tn(n_pad):
    # 256-wide output panels keep the 2x256^2 MXUs (v6e/v7x) fully fed and halve the
    # per-grid-step overhead; fall back to 128 when 256 does not divide the padded size.
    return 256 if n_pad % 256 == 0 else 128


def _pick_chunk(n_pad):
    if n_pad <= 512:
        return n_pad
    for c in (512, 256, 128):
        if n_pad % c == 0:
            return c
    return n_pad


def _vmem_budget_bytes():
    # ~3/4 of physical VMEM, capped at 100 MiB: ~96 MiB on 128 MiB v5e/v6e, ~48 MiB on
    # 64 MiB-per-core v7x. Conservative fallback if the query is unavailable.
    cap = 64 << 20
    try:
        cap = int(getattr(pltpu.get_tpu_info(), "vmem_capacity_bytes", cap))
    except Exception:
        pass
    return min(cap * 3 // 4, 100 << 20)


def mm_chain(x1, x2, *, tn=None, mxu_dtype=None):
    """Returns x1.T @ (x1 @ x2), matching the reference module's forward."""
    n, k = x1.shape
    k2, m = x2.shape
    assert k == k2 and n == k and m == n, "reference module implies square NxN operands"

    # Pad ragged sizes up to a lane-dense multiple of 128 (zero padding is exact for
    # this matmul chain); the result is sliced back to (n, n).
    # TODO(synk): for ragged N that fully fits VMEM, a grid=(1,) full-array-block variant
    # would avoid these padded HBM copies entirely.
    n_pad = _round_up(max(n, 128), 128)
    if n_pad != n:
        x1p = jnp.zeros((n_pad, n_pad), x1.dtype).at[:n, :n].set(x1)
        x2p = jnp.zeros((n_pad, n_pad), x2.dtype).at[:n, :n].set(x2)
    else:
        x1p, x2p = x1, x2

    if tn is None:
        tn = _pick_tn(n_pad)
    tn = min(tn, n_pad)
    assert n_pad % tn == 0 and tn % 128 == 0, "column tile must be lane-dense"

    k_chunk = _pick_chunk(n_pad)
    itemsize = jnp.dtype(x1.dtype).itemsize

    # VMEM footprint: single-buffered resident x1, double-buffered x2/out column panels,
    # f32 accumulator scratch, plus in-kernel v1/v2 chunk temporaries.
    footprint = (
        itemsize * (n_pad * n_pad + 4 * n_pad * tn)
        + 4 * (2 * n_pad * tn + k_chunk * tn)
    )
    budget = _vmem_budget_bytes()
    # TODO(synk): beyond this the x1-resident scheme overflows VMEM; fall back to a
    # 3-axis (i, j, k) tiled matmul pair with pl.when-initialized f32 accumulators.
    assert footprint <= budget, "x1-resident scheme exceeds the VMEM budget"
    vmem_limit = int(min(max(footprint + (8 << 20), 32 << 20), budget))

    n_panels = n_pad // tn
    dim_sem = ("parallel",) if n_panels > 1 else ("arbitrary",)

    out = pl.pallas_call(
        functools.partial(_mm_chain_kernel, k_chunk=k_chunk, mxu_dtype=mxu_dtype),
        out_shape=jax.ShapeDtypeStruct((n_pad, n_pad), x1.dtype),
        grid_spec=pltpu.PrefetchScalarGridSpec(
            num_scalar_prefetch=0,
            grid=(n_panels,),
            in_specs=[
                # x1: fully VMEM resident; its block index never changes, so one buffer
                # suffices (no point double-buffering a constant block).
                pl.BlockSpec((n_pad, n_pad), lambda j: (0, 0),
                             pipeline_mode=pl.Buffered(1)),
                # x2: lane-dense column panel, double-buffered by the pipeline.
                pl.BlockSpec((n_pad, tn), lambda j: (0, j)),
            ],
            out_specs=pl.BlockSpec((n_pad, tn), lambda j: (0, j)),
            scratch_shapes=[pltpu.VMEM((n_pad, tn), jnp.float32)],
        ),
        compiler_params=pltpu.CompilerParams(
            dimension_semantics=dim_sem,
            vmem_limit_bytes=vmem_limit,
        ),
        cost_estimate=pl.CostEstimate(
            flops=4 * n_pad ** 3,
            transcendentals=0,
            bytes_accessed=3 * itemsize * n_pad * n_pad,
        ),
    )(x1p, x2p)

    if n_pad != n:
        out = out[:n, :n]
    return out


if __name__ == "__main__":
    key = jax.random.PRNGKey(0)

    # N=3 matches the reference module's 3x3 inputs (padded path, single panel);
    # N=256 exercises an exact 256-wide panel; N=1024 exercises the multi-panel grid
    # (4 panels, parallel semantics) and the multi-chunk accumulation loop.
    for n in (3, 256, 1024):
        k1, k2 = jax.random.split(jax.random.fold_in(key, n))
        x1 = jax.random.normal(k1, (n, n), dtype=jnp.float32)
        x2 = jax.random.normal(k2, (n, n), dtype=jnp.float32)

        out = jax.block_until_ready(mm_chain(x1, x2))

        ref = jnp.matmul(
            x1.T,
            jnp.matmul(x1, x2, precision=lax.Precision.HIGHEST),
            precision=lax.Precision.HIGHEST,
        )
        assert out.shape == ref.shape
        # Max-normalized error; the loose bound also covers a default-precision
        # (single-pass bf16) MXU lowering of the f32 dots.
        rel_err = jnp.max(jnp.abs(out - ref)) / (jnp.max(jnp.abs(ref)) + 1e-12)
        assert rel_err < 1e-2, f"mismatch vs reference at N={n}: rel_err={rel_err}"

    print("KERNEL_OK")
</pallas_src>

<mosaic_0001>
module attributes {stable_mosaic.version = 11 : i64} {
  func.func @_mm_chain_kernel(%arg0: i32, %arg1: memref<128x128xf32, #tpu.memory_space<vmem>>, %arg2: memref<128x128xf32, #tpu.memory_space<vmem>>, %arg3: memref<128x128xf32, #tpu.memory_space<vmem>>, %arg4: memref<128x128xf32, #tpu.memory_space<vmem>>) attributes {dimension_semantics = [#tpu.dimension_semantics<arbitrary>], iteration_bounds = array<i64: 1>, scalar_prefetch = 0 : i64, scratch_operands = 1 : i64, tpu.core_type = #tpu.core_type<tc>, window_params = [{pipeline_mode = #tpu.pipeline_mode<synchronous>, transform_indices = @transform_0, window_bounds = array<i64: 128, 128>}, {transform_indices = @transform_1, window_bounds = array<i64: 128, 128>}, {transform_indices = @transform_2, window_bounds = array<i64: 128, 128>}]} {
    %c0 = arith.constant 0 : index
    %c0_0 = arith.constant 0 : index
    %0 = vector.load %arg2[%c0, %c0_0] : memref<128x128xf32, #tpu.memory_space<vmem>>, vector<128x128xf32>
    %cst = arith.constant 0.000000e+00 : f32
    %1 = vector.broadcast %cst : f32 to vector<128x128xf32>
    %c0_1 = arith.constant 0 : index
    %c0_2 = arith.constant 0 : index
    %2 = vector.load %arg4[%c0_1, %c0_2] : memref<128x128xf32, #tpu.memory_space<vmem>>, vector<128x128xf32>
    tpu.vector_store %arg4[%c0_1, %c0_2], %1 {strides = array<i32>} : memref<128x128xf32, #tpu.memory_space<vmem>>, vector<128x128xf32>,
    %c0_i32 = arith.constant 0 : i32
    %c128_i32 = arith.constant 128 : i32
    %3 = arith.muli %c0_i32, %c128_i32 : i32
    %4 = tpu.assume_multiple %3, 128 : i32
    %5 = arith.index_cast %4 : i32 to index
    %c0_3 = arith.constant 0 : index
    %6 = vector.load %arg1[%5, %c0_3] : memref<128x128xf32, #tpu.memory_space<vmem>>, vector<128x128xf32>
    %cst_4 = arith.constant dense<0.000000e+00> : vector<128x128xf32>
    %7 = tpu.matmul %6, %0, %cst_4 {dimension_numbers = #tpu.dot_dimension_numbers<[1], [0], [0], [1], [0, 0, 1, 1], [], []>} : vector<128x128xf32>, vector<128x128xf32>, vector<128x128xf32> -> vector<128x128xf32>
    %cst_5 = arith.constant dense<0.000000e+00> : vector<128x128xf32>
    %8 = tpu.matmul %6, %7, %cst_5 {dimension_numbers = #tpu.dot_dimension_numbers<[0], [0], [1], [1], [0, 1, 1, 1], [], []>} : vector<128x128xf32>, vector<128x128xf32>, vector<128x128xf32> -> vector<128x128xf32>
    %c0_6 = arith.constant 0 : index
    %c0_7 = arith.constant 0 : index
    %9 = vector.load %arg4[%c0_6, %c0_7] : memref<128x128xf32, #tpu.memory_space<vmem>>, vector<128x128xf32>
    %10 = arith.addf %9, %8 : vector<128x128xf32>
    %c0_8 = arith.constant 0 : index
    %c0_9 = arith.constant 0 : index
    %11 = vector.load %arg4[%c0_8, %c0_9] : memref<128x128xf32, #tpu.memory_space<vmem>>, vector<128x128xf32>
    tpu.vector_store %arg4[%c0_8, %c0_9], %10 {strides = array<i32>} : memref<128x128xf32, #tpu.memory_space<vmem>>, vector<128x128xf32>,
    %c1_i32 = arith.constant 1 : i32
    %c0_10 = arith.constant 0 : index
    %c0_11 = arith.constant 0 : index
    %12 = vector.load %arg4[%c0_10, %c0_11] : memref<128x128xf32, #tpu.memory_space<vmem>>, vector<128x128xf32>
    %c0_12 = arith.constant 0 : index
    %c0_13 = arith.constant 0 : index
    %13 = vector.load %arg3[%c0_12, %c0_13] : memref<128x128xf32, #tpu.memory_space<vmem>>, vector<128x128xf32>
    tpu.vector_store %arg3[%c0_12, %c0_13], %12 {strides = array<i32>} : memref<128x128xf32, #tpu.memory_space<vmem>>, vector<128x128xf32>,
    return
  }
  func.func @transform_0(%arg0: i32) -> (i32, i32) {
    %c0_i32 = arith.constant 0 : i32
    %c0_i32_0 = arith.constant 0 : i32
    %c0_i32_1 = arith.constant 0 : i32
    return %c0_i32, %c0_i32_0 : i32, i32
  }
  func.func @transform_1(%arg0: i32) -> (i32, i32) {
    %c0_i32 = arith.constant 0 : i32
    %c0_i32_0 = arith.constant 0 : i32
    return %c0_i32, %arg0 : i32, i32
  }
  func.func @transform_2(%arg0: i32) -> (i32, i32) {
    %c0_i32 = arith.constant 0 : i32
    %c0_i32_0 = arith.constant 0 : i32
    return %c0_i32, %arg0 : i32, i32
  }
}

</mosaic_0001>

<llo_original>
// kernel: tpu_custom_call.1
$region0: #{tpu_custom_call.1}
  #allocation0 [shape = 'u32[]', space=smem, size = 0x4, offset = 0x4, fixed_abs, tag = 'smem constant byte address 0x4 - core index']
  #allocation1 [shape = 'u32[144,128]{1,0:T(1,128)}', space=vmem, size = 0x12000, scoped, tag = 'internal scratch']
  #allocation2 [shape = 'f32[128,128]{1,0:T(8,128)}', space=vmem, size = 0x10000, scoped, tag = 'scratch operand']
  %s0 = inlined_call_operand.hbm [shape: f32[128,128], index: 0, kind: input, shape index: {}]
  %s1 = inlined_call_operand.hbm [shape: f32[128,128], index: 1, kind: input, shape index: {}]
  %s2 = inlined_call_operand.hbm [shape: f32[128,128], index: 2, kind: output, shape index: {}]
  %s3 = sld [smem:[#allocation0]]
  $region26: #{tpu_custom_call.1} parent=0
    _
  %s5 = ssub.s32 1, %s3
  %s6 = scalar_select 0, %s5, %s3
  $region1: #{tpu_custom_call.1} parent=0
    #allocation3 [shape = 'u8[65536]{0}', space=vmem, size = 0x10000, scoped, tag = 'input window, operand 0, single buffered']
    #allocation4 [shape = 's32[1]{0}', space=sflag, size = 0x4, scoped, tag = 'scoped memory for tpu_custom_call.1']
    #allocation5 [shape = 's32[1]{0}', space=sflag, size = 0x4, scoped, tag = 'scoped memory for tpu_custom_call.1']
    #allocation6 [shape = 'u8[65536]{0}', space=vmem, size = 0x10000, scoped, tag = 'input window, operand 1, single buffered']
    #allocation7 [shape = 's32[1]{0}', space=sflag, size = 0x4, scoped, tag = 'scoped memory for tpu_custom_call.1']
    #allocation8 [shape = 'u8[65536]{0}', space=vmem, size = 0x10000, scoped, tag = 'output window, operand 0, single buffered']
    %7 = vsyncpa [#allocation4], 0
    %8 = vsyncpa [#allocation7], 0
    %9 = vsyncpa [#allocation5], 0
    // Predicated region
    $region2: #{tpu_custom_call.1} parent=1 // pred_check
      _
    $region3: #{tpu_custom_call.1} parent=1 // pred_check_branch
      %11 = sbr.rel (0) target = $region5
    $region4: #{tpu_custom_call.1} parent=1 // pred_region
      %s13 = ssub.s32 2048, 2048
      %14 = vsyncadd [#allocation4], %s13
      %s15 = sshll.u32 [#allocation3], 4
      %s16 = int_to_ptr.vmem [resolvable:$true] %s15
      %21 = dma.hbm_to_vmem [thread:$0]  %s0, 2048, %s16, [#allocation4], 128, 128, 8
    $region5: #{tpu_custom_call.1} parent=1 // pred_fallthru
      _
    // Predicated region
    $region6: #{tpu_custom_call.1} parent=1 // pred_check
      _
    $region7: #{tpu_custom_call.1} parent=1 // pred_check_branch
      %23 = sbr.rel (0) target = $region9
    $region8: #{tpu_custom_call.1} parent=1 // pred_region
      %s25 = ssub.s32 2048, 2048
      %26 = vsyncadd [#allocation7], %s25
      %s27 = sshll.u32 [#allocation6], 4
      %s28 = int_to_ptr.vmem [resolvable:$true] %s27
      %33 = dma.hbm_to_vmem [thread:$0]  %s1, 2048, %s28, [#allocation7], 128, 128, 8
    $region9: #{tpu_custom_call.1} parent=1 // pred_fallthru
      _
    // Predicated region
    $region10: #{tpu_custom_call.1} parent=1 // pred_check
      _
    $region11: #{tpu_custom_call.1} parent=1 // pred_check_branch
      %35 = sbr.rel (0) target = $region13
    $region12: #{tpu_custom_call.1} parent=1 // pred_region
      %36 = dma.done [#allocation4], 2048
    $region13: #{tpu_custom_call.1} parent=1 // pred_fallthru
      _
    // Predicated region
    $region14: #{tpu_custom_call.1} parent=1 // pred_check
      _
    $region15: #{tpu_custom_call.1} parent=1 // pred_check_branch
      %38 = sbr.rel (0) target = $region17
    $region16: #{tpu_custom_call.1} parent=1 // pred_region
      %39 = dma.done [#allocation7], 2048
    $region17: #{tpu_custom_call.1} parent=1 // pred_fallthru
      _
    %v40 = vld [vmem:[#allocation6] sm:$0xff]
    %v41 = vld [vmem:[#allocation6 + $0x8] sm:$0xff]
    %v42 = vld [vmem:[#allocation6 + $0x10] sm:$0xff]
    %v43 = vld [vmem:[#allocation6 + $0x18] sm:$0xff]
    %v44 = vld [vmem:[#allocation6 + $0x20] sm:$0xff]
    %v45 = vld [vmem:[#allocation6 + $0x28] sm:$0xff]
    %v46 = vld [vmem:[#allocation6 + $0x30] sm:$0xff]
    %v47 = vld [vmem:[#allocation6 + $0x38] sm:$0xff]
    %v48 = vld [vmem:[#allocation6 + $0x40] sm:$0xff]
    %v49 = vld [vmem:[#allocation6 + $0x48] sm:$0xff]
    %v50 = vld [vmem:[#allocation6 + $0x50] sm:$0xff]
    %v51 = vld [vmem:[#allocation6 + $0x58] sm:$0xff]
    %v52 = vld [vmem:[#allocation6 + $0x60] sm:$0xff]
    %v53 = vld [vmem:[#allocation6 + $0x68] sm:$0xff]
    %v54 = vld [vmem:[#allocation6 + $0x70] sm:$0xff]
    %v55 = vld [vmem:[#allocation6 + $0x78] sm:$0xff]
    %56 = vst [vmem:[#allocation2] sm:$0xff] 0.0
    %57 = vst [vmem:[#allocation2 + $0x8] sm:$0xff] 0.0
    %58 = vst [vmem:[#allocation2 + $0x10] sm:$0xff] 0.0
    %59 = vst [vmem:[#allocation2 + $0x18] sm:$0xff] 0.0
    %60 = vst [vmem:[#allocation2 + $0x20] sm:$0xff] 0.0
    %61 = vst [vmem:[#allocation2 + $0x28] sm:$0xff] 0.0
    %62 = vst [vmem:[#allocation2 + $0x30] sm:$0xff] 0.0
    %63 = vst [vmem:[#allocation2 + $0x38] sm:$0xff] 0.0
    %64 = vst [vmem:[#allocation2 + $0x40] sm:$0xff] 0.0
    %65 = vst [vmem:[#allocation2 + $0x48] sm:$0xff] 0.0
    %66 = vst [vmem:[#allocation2 + $0x50] sm:$0xff] 0.0
    %67 = vst [vmem:[#allocation2 + $0x58] sm:$0xff] 0.0
    %68 = vst [vmem:[#allocation2 + $0x60] sm:$0xff] 0.0
    %69 = vst [vmem:[#allocation2 + $0x68] sm:$0xff] 0.0
    %70 = vst [vmem:[#allocation2 + $0x70] sm:$0xff] 0.0
    %71 = vst [vmem:[#allocation2 + $0x78] sm:$0xff] 0.0
    %v72 = vld [vmem:[#allocation3] sm:$0xff]
    %v73 = vld [vmem:[#allocation3 + $0x8] sm:$0xff]
    %v74 = vld [vmem:[#allocation3 + $0x10] sm:$0xff]
    %v75 = vld [vmem:[#allocation3 + $0x18] sm:$0xff]
    %v76 = vld [vmem:[#allocation3 + $0x20] sm:$0xff]
    %v77 = vld [vmem:[#allocation3 + $0x28] sm:$0xff]
    %v78 = vld [vmem:[#allocation3 + $0x30] sm:$0xff]
    %v79 = vld [vmem:[#allocation3 + $0x38] sm:$0xff]
    %v80 = vld [vmem:[#allocation3 + $0x40] sm:$0xff]
    %v81 = vld [vmem:[#allocation3 + $0x48] sm:$0xff]
    %v82 = vld [vmem:[#allocation3 + $0x50] sm:$0xff]
    %v83 = vld [vmem:[#allocation3 + $0x58] sm:$0xff]
    %v84 = vld [vmem:[#allocation3 + $0x60] sm:$0xff]
    %v85 = vld [vmem:[#allocation3 + $0x68] sm:$0xff]
    %v86 = vld [vmem:[#allocation3 + $0x70] sm:$0xff]
    %v87 = vld [vmem:[#allocation3 + $0x78] sm:$0xff]
    %88 = vmatprep.subr.mxu0 0.0
    %89 = vmatpush1.msra.mxu0 %v40
    %90 = vmatprep.subr.mxu0 0.0
    %91 = vmatpush1.msra.mxu0 %v41
    %92 = vmatprep.subr.mxu0 0.0
    %93 = vmatpush1.msra.mxu0 %v42
    %94 = vmatprep.subr.mxu0 0.0
    %95 = vmatpush1.msra.mxu0 %v43
    %96 = vmatprep.subr.mxu0 0.0
    %97 = vmatpush1.msra.mxu0 %v44
    %98 = vmatprep.subr.mxu0 0.0
    %99 = vmatpush1.msra.mxu0 %v45
    %100 = vmatprep.subr.mxu0 0.0
    %101 = vmatpush1.msra.mxu0 %v46
    %102 = vmatprep.subr.mxu0 0.0
    %103 = vmatpush1.msra.mxu0 %v47
    %104 = vmatprep.subr.mxu0 0.0
    %105 = vmatpush1.msra.mxu0 %v48
    %106 = vmatprep.subr.mxu0 0.0
    %107 = vmatpush1.msra.mxu0 %v49
    %108 = vmatprep.subr.mxu0 0.0
    %109 = vmatpush1.msra.mxu0 %v50
    %110 = vmatprep.subr.mxu0 0.0
    %111 = vmatpush1.msra.mxu0 %v51
    %112 = vmatprep.subr.mxu0 0.0
    %113 = vmatpush1.msra.mxu0 %v52
    %114 = vmatprep.subr.mxu0 0.0
    %115 = vmatpush1.msra.mxu0 %v53
    %116 = vmatprep.subr.mxu0 0.0
    %117 = vmatpush1.msra.mxu0 %v54
    %118 = vmatprep.subr.mxu0 0.0
    %119 = vmatpush1.msra.mxu0 %v55
    %120 = vmatprep.subr.mxu0 0.0
    %121 = vmatpush1.msra.mxu0 0.0
    %122 = vmatprep.subr.mxu0 0.0
    %123 = vmatpush1.msra.mxu0 0.0
    %124 = vmatprep.subr.mxu0 0.0
    %125 = vmatpush1.msra.mxu0 0.0
    %126 = vmatprep.subr.mxu0 0.0
    %127 = vmatpush1.msra.mxu0 0.0
    %128 = vmatprep.subr.mxu0 0.0
    %129 = vmatpush1.msra.mxu0 0.0
    %130 = vmatprep.subr.mxu0 0.0
    %131 = vmatpush1.msra.mxu0 0.0
    %132 = vmatprep.subr.mxu0 0.0
    %133 = vmatpush1.msra.mxu0 0.0
    %134 = vmatprep.subr.mxu0 0.0
    %135 = vmatpush1.msra.mxu0 0.0
    %136 = vmatprep.subr.mxu0 0.0
    %137 = vmatpush1.msra.mxu0 0.0
    %138 = vmatprep.subr.mxu0 0.0
    %139 = vmatpush1.msra.mxu0 0.0
    %140 = vmatprep.subr.mxu0 0.0
    %141 = vmatpush1.msra.mxu0 0.0
    %142 = vmatprep.subr.mxu0 0.0
    %143 = vmatpush1.msra.mxu0 0.0
    %144 = vmatprep.subr.mxu0 0.0
    %145 = vmatpush1.msra.mxu0 0.0
    %146 = vmatprep.subr.mxu0 0.0
    %147 = vmatpush1.msra.mxu0 0.0
    %148 = vmatprep.subr.mxu0 0.0
    %149 = vmatpush1.msra.mxu0 0.0
    %150 = vmatprep.subr.mxu0 0.0
    %151 = vmatpush1.msra.mxu0 0.0
    %152 = vmatprep.mubr.f32.mxu0 0.0
    %153 = vmatmul.mubr.f32.gmra.mrb[0].mxu0 %v72
    %v154 = vpop.f32.mrb[0].mxu0
    %v155 = vadd.f32 0.0, %v154
    %v156 = vpop.f32.mrb[0].mxu0
    %157 = vmatprep.mubr.f32.mxu0 0.0
    %158 = vmatmul.mubr.f32.gmra.mrb[0].mxu0 %v73
    %v159 = vpop.f32.mrb[0].mxu0
    %v160 = vadd.f32 0.0, %v159
    %v161 = vpop.f32.mrb[0].mxu0
    %162 = vmatprep.mubr.f32.mxu0 0.0
    %163 = vmatmul.mubr.f32.gmra.mrb[0].mxu0 %v74
    %v164 = vpop.f32.mrb[0].mxu0
    %v165 = vadd.f32 0.0, %v164
    %v166 = vpop.f32.mrb[0].mxu0
    %167 = vmatprep.mubr.f32.mxu0 0.0
    %168 = vmatmul.mubr.f32.gmra.mrb[0].mxu0 %v75
    %v169 = vpop.f32.mrb[0].mxu0
    %v170 = vadd.f32 0.0, %v169
    %v171 = vpop.f32.mrb[0].mxu0
    %172 = vmatprep.mubr.f32.mxu0 0.0
    %173 = vmatmul.mubr.f32.gmra.mrb[0].mxu0 %v76
    %v174 = vpop.f32.mrb[0].mxu0
    %v175 = vadd.f32 0.0, %v174
    %v176 = vpop.f32.mrb[0].mxu0
    %177 = vmatprep.mubr.f32.mxu0 0.0
    %178 = vmatmul.mubr.f32.gmra.mrb[0].mxu0 %v77
    %v179 = vpop.f32.mrb[0].mxu0
    %v180 = vadd.f32 0.0, %v179
    %v181 = vpop.f32.mrb[0].mxu0
    %182 = vmatprep.mubr.f32.mxu0 0.0
    %183 = vmatmul.mubr.f32.gmra.mrb[0].mxu0 %v78
    %v184 = vpop.f32.mrb[0].mxu0
    %v185 = vadd.f32 0.0, %v184
    %v186 = vpop.f32.mrb[0].mxu0
    %187 = vmatprep.mubr.f32.mxu0 0.0
    %188 = vmatmul.mubr.f32.gmra.mrb[0].mxu0 %v79
    %v189 = vpop.f32.mrb[0].mxu0
    %v190 = vadd.f32 0.0, %v189
    %v191 = vpop.f32.mrb[0].mxu0
    %192 = vmatprep.mubr.f32.mxu0 0.0
    %193 = vmatmul.mubr.f32.gmra.mrb[0].mxu0 %v80
    %v194 = vpop.f32.mrb[0].mxu0
    %v195 = vadd.f32 0.0, %v194
    %v196 = vpop.f32.mrb[0].mxu0
    %197 = vmatprep.mubr.f32.mxu0 0.0
    %198 = vmatmul.mubr.f32.gmra.mrb[0].mxu0 %v81
    %v199 = vpop.f32.mrb[0].mxu0
    %v200 = vadd.f32 0.0, %v199
    %v201 = vpop.f32.mrb[0].mxu0
    %202 = vmatprep.mubr.f32.mxu0 0.0
    %203 = vmatmul.mubr.f32.gmra.mrb[0].mxu0 %v82
    %v204 = vpop.f32.mrb[0].mxu0
    %v205 = vadd.f32 0.0, %v204
    %v206 = vpop.f32.mrb[0].mxu0
    %207 = vmatprep.mubr.f32.mxu0 0.0
    %208 = vmatmul.mubr.f32.gmra.mrb[0].mxu0 %v83
    %v209 = vpop.f32.mrb[0].mxu0
    %v210 = vadd.f32 0.0, %v209
    %v211 = vpop.f32.mrb[0].mxu0
    %212 = vmatprep.mubr.f32.mxu0 0.0
    %213 = vmatmul.mubr.f32.gmra.mrb[0].mxu0 %v84
    %v214 = vpop.f32.mrb[0].mxu0
    %v215 = vadd.f32 0.0, %v214
    %v216 = vpop.f32.mrb[0].mxu0
    %217 = vmatprep.mubr.f32.mxu0 0.0
    %218 = vmatmul.mubr.f32.gmra.mrb[0].mxu0 %v85
    %v219 = vpop.f32.mrb[0].mxu0
    %v220 = vadd.f32 0.0, %v219
    %v221 = vpop.f32.mrb[0].mxu0
    %222 = vmatprep.mubr.f32.mxu0 0.0
    %223 = vmatmul.mubr.f32.gmra.mrb[0].mxu0 %v86
    %v224 = vpop.f32.mrb[0].mxu0
    %v225 = vadd.f32 0.0, %v224
    %v226 = vpop.f32.mrb[0].mxu0
    %227 = vmatprep.mubr.f32.mxu0 0.0
    %228 = vmatmul.mubr.f32.gmra.mrb[0].mxu0 %v87
    %v229 = vpop.f32.mrb[0].mxu0
    %v230 = vadd.f32 0.0, %v229
    %v231 = vpop.f32.mrb[0].mxu0
    %232 = vdwg.mxu0
    %233 = vxpose.xlu0.b32.start [1/16] %v72, 128
    %234 = vxpose.xlu0.b32.cont [2/16] %v73, 128
    %235 = vxpose.xlu0.b32.cont [3/16] %v74, 128
    %236 = vxpose.xlu0.b32.cont [4/16] %v75, 128
    %237 = vxpose.xlu0.b32.cont [5/16] %v76, 128
    %238 = vxpose.xlu0.b32.cont [6/16] %v77, 128
    %239 = vxpose.xlu0.b32.cont [7/16] %v78, 128
    %240 = vxpose.xlu0.b32.cont [8/16] %v79, 128
    %241 = vxpose.xlu0.b32.cont [9/16] %v80, 128
    %242 = vxpose.xlu0.b32.cont [10/16] %v81, 128
    %243 = vxpose.xlu0.b32.cont [11/16] %v82, 128
    %244 = vxpose.xlu0.b32.cont [12/16] %v83, 128
    %245 = vxpose.xlu0.b32.cont [13/16] %v84, 128
    %246 = vxpose.xlu0.b32.cont [14/16] %v85, 128
    %247 = vxpose.xlu0.b32.cont [15/16] %v86, 128
    %248 = vxpose.xlu0.b32.end [16/16] %v87, 128
    %v249 = vpop.trf.xlu0
    %v250 = vpop.trf.xlu0
    %v251 = vpop.trf.xlu0
    %v252 = vpop.trf.xlu0
    %v253 = vpop.trf.xlu0
    %v254 = vpop.trf.xlu0
    %v255 = vpop.trf.xlu0
    %v256 = vpop.trf.xlu0
    %v257 = vpop.trf.xlu0
    %v258 = vpop.trf.xlu0
    %v259 = vpop.trf.xlu0
    %v260 = vpop.trf.xlu0
    %v261 = vpop.trf.xlu0
    %v262 = vpop.trf.xlu0
    %v263 = vpop.trf.xlu0
    %v264 = vpop.trf.xlu0
    %265 = vmatprep.subr.mxu0 0.0
    %266 = vmatpush1.msra.mxu0 %v155
    %267 = vmatprep.subr.mxu0 0.0
    %268 = vmatpush1.msra.mxu0 %v160
    %269 = vmatprep.subr.mxu0 0.0
    %270 = vmatpush1.msra.mxu0 %v165
    %271 = vmatprep.subr.mxu0 0.0
    %272 = vmatpush1.msra.mxu0 %v170
    %273 = vmatprep.subr.mxu0 0.0
    %274 = vmatpush1.msra.mxu0 %v175
    %275 = vmatprep.subr.mxu0 0.0
    %276 = vmatpush1.msra.mxu0 %v180
    %277 = vmatprep.subr.mxu0 0.0
    %278 = vmatpush1.msra.mxu0 %v185
    %279 = vmatprep.subr.mxu0 0.0
    %280 = vmatpush1.msra.mxu0 %v190
    %281 = vmatprep.subr.mxu0 0.0
    %282 = vmatpush1.msra.mxu0 %v195
    %283 = vmatprep.subr.mxu0 0.0
    %284 = vmatpush1.msra.mxu0 %v200
    %285 = vmatprep.subr.mxu0 0.0
    %286 = vmatpush1.msra.mxu0 %v205
    %287 = vmatprep.subr.mxu0 0.0
    %288 = vmatpush1.msra.mxu0 %v210
    %289 = vmatprep.subr.mxu0 0.0
    %290 = vmatpush1.msra.mxu0 %v215
    %291 = vmatprep.subr.mxu0 0.0
    %292 = vmatpush1.msra.mxu0 %v220
    %293 = vmatprep.subr.mxu0 0.0
    %294 = vmatpush1.msra.mxu0 %v225
    %295 = vmatprep.subr.mxu0 0.0
    %296 = vmatpush1.msra.mxu0 %v230
    %297 = vmatprep.subr.mxu0 0.0
    %298 = vmatpush1.msra.mxu0 0.0
    %299 = vmatprep.subr.mxu0 0.0
    %300 = vmatpush1.msra.mxu0 0.0
    %301 = vmatprep.subr.mxu0 0.0
    %302 = vmatpush1.msra.mxu0 0.0
    %303 = vmatprep.subr.mxu0 0.0
    %304 = vmatpush1.msra.mxu0 0.0
    %305 = vmatprep.subr.mxu0 0.0
    %306 = vmatpush1.msra.mxu0 0.0
    %307 = vmatprep.subr.mxu0 0.0
    %308 = vmatpush1.msra.mxu0 0.0
    %309 = vmatprep.subr.mxu0 0.0
    %310 = vmatpush1.msra.mxu0 0.0
    %311 = vmatprep.subr.mxu0 0.0
    %312 = vmatpush1.msra.mxu0 0.0
    %313 = vmatprep.subr.mxu0 0.0
    %314 = vmatpush1.msra.mxu0 0.0
    %315 = vmatprep.subr.mxu0 0.0
    %316 = vmatpush1.msra.mxu0 0.0
    %317 = vmatprep.subr.mxu0 0.0
    %318 = vmatpush1.msra.mxu0 0.0
    %319 = vmatprep.subr.mxu0 0.0
    %320 = vmatpush1.msra.mxu0 0.0
    %321 = vmatprep.subr.mxu0 0.0
    %322 = vmatpush1.msra.mxu0 0.0
    %323 = vmatprep.subr.mxu0 0.0
    %324 = vmatpush1.msra.mxu0 0.0
    %325 = vmatprep.subr.mxu0 0.0
    %326 = vmatpush1.msra.mxu0 0.0
    %327 = vmatprep.subr.mxu0 0.0
    %328 = vmatpush1.msra.mxu0 0.0
    %329 = vmatprep.mubr.f32.mxu0 0.0
    %330 = vmatmul.mubr.f32.gmra.mrb[0].mxu0 %v249
    %v331 = vpop.f32.mrb[0].mxu0
    %v332 = vadd.f32 0.0, %v331
    %v333 = vpop.f32.mrb[0].mxu0
    %334 = vmatprep.mubr.f32.mxu0 0.0
    %335 = vmatmul.mubr.f32.gmra.mrb[0].mxu0 %v250
    %v336 = vpop.f32.mrb[0].mxu0
    %v337 = vadd.f32 0.0, %v336
    %v338 = vpop.f32.mrb[0].mxu0
    %339 = vmatprep.mubr.f32.mxu0 0.0
    %340 = vmatmul.mubr.f32.gmra.mrb[0].mxu0 %v251
    %v341 = vpop.f32.mrb[0].mxu0
    %v342 = vadd.f32 0.0, %v341
    %v343 = vpop.f32.mrb[0].mxu0
    %344 = vmatprep.mubr.f32.mxu0 0.0
    %345 = vmatmul.mubr.f32.gmra.mrb[0].mxu0 %v252
    %v346 = vpop.f32.mrb[0].mxu0
    %v347 = vadd.f32 0.0, %v346
    %v348 = vpop.f32.mrb[0].mxu0
    %349 = vmatprep.mubr.f32.mxu0 0.0
    %350 = vmatmul.mubr.f32.gmra.mrb[0].mxu0 %v253
    %v351 = vpop.f32.mrb[0].mxu0
    %v352 = vadd.f32 0.0, %v351
    %v353 = vpop.f32.mrb[0].mxu0
    %354 = vmatprep.mubr.f32.mxu0 0.0
    %355 = vmatmul.mubr.f32.gmra.mrb[0].mxu0 %v254
    %v356 = vpop.f32.mrb[0].mxu0
    %v357 = vadd.f32 0.0, %v356
    %v358 = vpop.f32.mrb[0].mxu0
    %359 = vmatprep.mubr.f32.mxu0 0.0
    %360 = vmatmul.mubr.f32.gmra.mrb[0].mxu0 %v255
    %v361 = vpop.f32.mrb[0].mxu0
    %v362 = vadd.f32 0.0, %v361
    %v363 = vpop.f32.mrb[0].mxu0
    %364 = vmatprep.mubr.f32.mxu0 0.0
    %365 = vmatmul.mubr.f32.gmra.mrb[0].mxu0 %v256
    %v366 = vpop.f32.mrb[0].mxu0
    %v367 = vadd.f32 0.0, %v366
    %v368 = vpop.f32.mrb[0].mxu0
    %369 = vmatprep.mubr.f32.mxu0 0.0
    %370 = vmatmul.mubr.f32.gmra.mrb[0].mxu0 %v257
    %v371 = vpop.f32.mrb[0].mxu0
    %v372 = vadd.f32 0.0, %v371
    %v373 = vpop.f32.mrb[0].mxu0
    %374 = vmatprep.mubr.f32.mxu0 0.0
    %375 = vmatmul.mubr.f32.gmra.mrb[0].mxu0 %v258
    %v376 = vpop.f32.mrb[0].mxu0
    %v377 = vadd.f32 0.0, %v376
    %v378 = vpop.f32.mrb[0].mxu0
    %379 = vmatprep.mubr.f32.mxu0 0.0
    %380 = vmatmul.mubr.f32.gmra.mrb[0].mxu0 %v259
    %v381 = vpop.f32.mrb[0].mxu0
    %v382 = vadd.f32 0.0, %v381
    %v383 = vpop.f32.mrb[0].mxu0
    %384 = vmatprep.mubr.f32.mxu0 0.0
    %385 = vmatmul.mubr.f32.gmra.mrb[0].mxu0 %v260
    %v386 = vpop.f32.mrb[0].mxu0
    %v387 = vadd.f32 0.0, %v386
    %v388 = vpop.f32.mrb[0].mxu0
    %389 = vmatprep.mubr.f32.mxu0 0.0
    %390 = vmatmul.mubr.f32.gmra.mrb[0].mxu0 %v261
    %v391 = vpop.f32.mrb[0].mxu0
    %v392 = vadd.f32 0.0, %v391
    %v393 = vpop.f32.mrb[0].mxu0
    %394 = vmatprep.mubr.f32.mxu0 0.0
    %395 = vmatmul.mubr.f32.gmra.mrb[0].mxu0 %v262
    %v396 = vpop.f32.mrb[0].mxu0
    %v397 = vadd.f32 0.0, %v396
    %v398 = vpop.f32.mrb[0].mxu0
    %399 = vmatprep.mubr.f32.mxu0 0.0
    %400 = vmatmul.mubr.f32.gmra.mrb[0].mxu0 %v263
    %v401 = vpop.f32.mrb[0].mxu0
    %v402 = vadd.f32 0.0, %v401
    %v403 = vpop.f32.mrb[0].mxu0
    %404 = vmatprep.mubr.f32.mxu0 0.0
    %405 = vmatmul.mubr.f32.gmra.mrb[0].mxu0 %v264
    %v406 = vpop.f32.mrb[0].mxu0
    %v407 = vadd.f32 0.0, %v406
    %v408 = vpop.f32.mrb[0].mxu0
    %409 = vdwg.mxu0
    %v410 = vld [vmem:[#allocation2] sm:$0xff]
    %v411 = vld [vmem:[#allocation2 + $0x8] sm:$0xff]
    %v412 = vld [vmem:[#allocation2 + $0x10] sm:$0xff]
    %v413 = vld [vmem:[#allocation2 + $0x18] sm:$0xff]
    %v414 = vld [vmem:[#allocation2 + $0x20] sm:$0xff]
    %v415 = vld [vmem:[#allocation2 + $0x28] sm:$0xff]
    %v416 = vld [vmem:[#allocation2 + $0x30] sm:$0xff]
    %v417 = vld [vmem:[#allocation2 + $0x38] sm:$0xff]
    %v418 = vld [vmem:[#allocation2 + $0x40] sm:$0xff]
    %v419 = vld [vmem:[#allocation2 + $0x48] sm:$0xff]
    %v420 = vld [vmem:[#allocation2 + $0x50] sm:$0xff]
    %v421 = vld [vmem:[#allocation2 + $0x58] sm:$0xff]
    %v422 = vld [vmem:[#allocation2 + $0x60] sm:$0xff]
    %v423 = vld [vmem:[#allocation2 + $0x68] sm:$0xff]
    %v424 = vld [vmem:[#allocation2 + $0x70] sm:$0xff]
    %v425 = vld [vmem:[#allocation2 + $0x78] sm:$0xff]
    %v426 = vadd.f32 %v410, %v332
    %v427 = vadd.f32 %v411, %v337
    %v428 = vadd.f32 %v412, %v342
    %v429 = vadd.f32 %v413, %v347
    %v430 = vadd.f32 %v414, %v352
    %v431 = vadd.f32 %v415, %v357
    %v432 = vadd.f32 %v416, %v362
    %v433 = vadd.f32 %v417, %v367
    %v434 = vadd.f32 %v418, %v372
    %v435 = vadd.f32 %v419, %v377
    %v436 = vadd.f32 %v420, %v382
    %v437 = vadd.f32 %v421, %v387
    %v438 = vadd.f32 %v422, %v392
    %v439 = vadd.f32 %v423, %v397
    %v440 = vadd.f32 %v424, %v402
    %v441 = vadd.f32 %v425, %v407
    %442 = vst [vmem:[#allocation2] sm:$0xff] %v426
    %443 = vst [vmem:[#allocation2 + $0x8] sm:$0xff] %v427
    %444 = vst [vmem:[#allocation2 + $0x10] sm:$0xff] %v428
    %445 = vst [vmem:[#allocation2 + $0x18] sm:$0xff] %v429
    %446 = vst [vmem:[#allocation2 + $0x20] sm:$0xff] %v430
    %447 = vst [vmem:[#allocation2 + $0x28] sm:$0xff] %v431
    %448 = vst [vmem:[#allocation2 + $0x30] sm:$0xff] %v432
    %449 = vst [vmem:[#allocation2 + $0x38] sm:$0xff] %v433
    %450 = vst [vmem:[#allocation2 + $0x40] sm:$0xff] %v434
    %451 = vst [vmem:[#allocation2 + $0x48] sm:$0xff] %v435
    %452 = vst [vmem:[#allocation2 + $0x50] sm:$0xff] %v436
    %453 = vst [vmem:[#allocation2 + $0x58] sm:$0xff] %v437
    %454 = vst [vmem:[#allocation2 + $0x60] sm:$0xff] %v438
    %455 = vst [vmem:[#allocation2 + $0x68] sm:$0xff] %v439
    %456 = vst [vmem:[#allocation2 + $0x70] sm:$0xff] %v440
    %457 = vst [vmem:[#allocation2 + $0x78] sm:$0xff] %v441
    %v458 = vld [vmem:[#allocation2] sm:$0xff]
    %v459 = vld [vmem:[#allocation2 + $0x8] sm:$0xff]
    %v460 = vld [vmem:[#allocation2 + $0x10] sm:$0xff]
    %v461 = vld [vmem:[#allocation2 + $0x18] sm:$0xff]
    %v462 = vld [vmem:[#allocation2 + $0x20] sm:$0xff]
    %v463 = vld [vmem:[#allocation2 + $0x28] sm:$0xff]
    %v464 = vld [vmem:[#allocation2 + $0x30] sm:$0xff]
    %v465 = vld [vmem:[#allocation2 + $0x38] sm:$0xff]
    %v466 = vld [vmem:[#allocation2 + $0x40] sm:$0xff]
    %v467 = vld [vmem:[#allocation2 + $0x48] sm:$0xff]
    %v468 = vld [vmem:[#allocation2 + $0x50] sm:$0xff]
    %v469 = vld [vmem:[#allocation2 + $0x58] sm:$0xff]
    %v470 = vld [vmem:[#allocation2 + $0x60] sm:$0xff]
    %v471 = vld [vmem:[#allocation2 + $0x68] sm:$0xff]
    %v472 = vld [vmem:[#allocation2 + $0x70] sm:$0xff]
    %v473 = vld [vmem:[#allocation2 + $0x78] sm:$0xff]
    %474 = vst [vmem:[#allocation8] sm:$0xff] %v458
    %475 = vst [vmem:[#allocation8 + $0x8] sm:$0xff] %v459
    %476 = vst [vmem:[#allocation8 + $0x10] sm:$0xff] %v460
    %477 = vst [vmem:[#allocation8 + $0x18] sm:$0xff] %v461
    %478 = vst [vmem:[#allocation8 + $0x20] sm:$0xff] %v462
    %479 = vst [vmem:[#allocation8 + $0x28] sm:$0xff] %v463
    %480 = vst [vmem:[#allocation8 + $0x30] sm:$0xff] %v464
    %481 = vst [vmem:[#allocation8 + $0x38] sm:$0xff] %v465
    %482 = vst [vmem:[#allocation8 + $0x40] sm:$0xff] %v466
    %483 = vst [vmem:[#allocation8 + $0x48] sm:$0xff] %v467
    %484 = vst [vmem:[#allocation8 + $0x50] sm:$0xff] %v468
    %485 = vst [vmem:[#allocation8 + $0x58] sm:$0xff] %v469
    %486 = vst [vmem:[#allocation8 + $0x60] sm:$0xff] %v470
    %487 = vst [vmem:[#allocation8 + $0x68] sm:$0xff] %v471
    %488 = vst [vmem:[#allocation8 + $0x70] sm:$0xff] %v472
    %489 = vst [vmem:[#allocation8 + $0x78] sm:$0xff] %v473
    // Predicated region
    $region18: #{tpu_custom_call.1} parent=1 // pred_check
      _
    $region19: #{tpu_custom_call.1} parent=1 // pred_check_branch
      %491 = sbr.rel (0) target = $region21
    $region20: #{tpu_custom_call.1} parent=1 // pred_region
      %s493 = ssub.s32 2048, 2048
      %494 = vsyncadd [#allocation5], %s493
      %s495 = sshll.u32 [#allocation8], 4
      %s496 = int_to_ptr.vmem [resolvable:$true] %s495
      %501 = dma.vmem_to_hbm [thread:$0]  %s496, 2048, %s2, [#allocation5], 128, 128, 8
    $region21: #{tpu_custom_call.1} parent=1 // pred_fallthru
      _
    // Predicated region
    $region22: #{tpu_custom_call.1} parent=1 // pred_check
      _
    $region23: #{tpu_custom_call.1} parent=1 // pred_check_branch
      %503 = sbr.rel (0) target = $region25
    $region24: #{tpu_custom_call.1} parent=1 // pred_region
      %504 = dma.done [#allocation5], 2048
    $region25: #{tpu_custom_call.1} parent=1 // pred_fallthru
      _
    %505 = vsyncpa [#allocation4], 1
    %506 = vsyncpa [#allocation7], 1
    %507 = vsyncpa [#allocation5], 1

</llo_original>
